<compile_context>
chip_gen: v6e
topology: v6e:2x2x1
jax: 0.10.0
libtpu: 0.0.40
codegen_flags: <defaults>
</compile_context>

<pallas_src>
import jax
import jax.numpy as jnp
from jax.experimental import pallas as pl
from jax.experimental.pallas import tpu as pltpu


# --------------------------------------------------------------------------
# Kernel
# --------------------------------------------------------------------------
def _make_superpixler_kernel(r_rows, sps, wc):
    """One grid step = one (image row-block, mask) pair."""
    th = r_rows * sps

    def kernel(img_ref, msk_ref, mv_ref, out_ref):
        # img_ref : (TH, WC)       image rows (resident across the mask axis)
        # msk_ref : (1, R, 1, WC)  int8 lane mask, nonzero => replace
        # mv_ref  : (1, WC)        replacement colours tiled over lanes (resident)
        # out_ref : (1, TH, WC)
        m = msk_ref[0].astype(jnp.int32)                              # (R, 1, WC)
        m = jnp.broadcast_to(m, (r_rows, sps, wc)).reshape(th, wc)    # sublane-aligned
        out_ref[0] = jnp.where(m != 0, mv_ref[...], img_ref[...])

    return kernel


# --------------------------------------------------------------------------
# Hardware / tiling helpers
# --------------------------------------------------------------------------
def _tpu_vmem_bytes():
    try:
        return int(pltpu.get_tpu_info().vmem_capacity_bytes)
    except Exception:
        return 64 << 20   # conservative: v7x per-TensorCore VMEM


def _num_tensorcores_per_chip():
    try:
        kind = jax.devices()[0].device_kind.lower()
    except Exception:
        return 1
    return 2 if any(t in kind for t in ("v7", "v4", "v5p")) else 1


def _pick_rows_per_block(h_super, sps, H, bytes_per_pixel_row, max_tile_bytes,
                         min_total_steps, n_masks):
    """Super-pixel rows per block. TH = R*sps must be a multiple of 8 (sublane
    tile) or equal H; prefer the largest tile that fits the VMEM budget while
    leaving >= min_total_steps total grid steps (keeps both v7x TensorCores
    pipelined). Returns None if no legal tiling exists."""
    valid = [r for r in range(1, h_super + 1)
             if (r * sps) % 8 == 0 or r * sps == H]
    if not valid:
        return None

    def total_steps(r):
        return (-(-H // (r * sps))) * n_masks

    target = min(min_total_steps, max(total_steps(r) for r in valid))
    cands = [r for r in valid if total_steps(r) >= target]
    fits = [r for r in cands if r * sps * bytes_per_pixel_row <= max_tile_bytes]
    # If nothing fits the budget (very wide images), take the smallest legal
    # tile; the caller raises vmem_limit_bytes to cover it.
    return max(fits) if fits else min(cands)


def _superpixler_plain(image_hwc, flat_masks, sps, mask_value, h_super, w_super, N):
    """Plain-XLA fallback (no clean Mosaic tiling for this configuration)."""
    H, W, _ = image_hwc.shape
    rep = (flat_masks.reshape(N, h_super, w_super) == 0)
    rep = jnp.repeat(jnp.repeat(rep, sps, axis=1), sps, axis=2)
    rep = jnp.pad(rep, ((0, 0), (0, H - h_super * sps), (0, W - w_super * sps)))
    return jnp.where(rep[..., None], mask_value, image_hwc[None])


# --------------------------------------------------------------------------
# Wrappers
# --------------------------------------------------------------------------
def superpixler_forward_batch(image_hwc, masks, super_pixel_size=16, mask_value=None):
    """Apply N super-pixel masks to one image (SHAP use case).

    image_hwc : (H, W, C) float array
    masks     : (N, ...) — each row is flattened / truncated / padded-with-1
                to h_super * w_super entries (mirrors the numpy glue).
    Returns (N, H, W, C) in the image dtype.
    """
    image_hwc = jnp.asarray(image_hwc)
    H, W, C = image_hwc.shape
    sps = int(super_pixel_size)
    h_super, w_super = H // sps, W // sps
    needed = h_super * w_super
    dtype = image_hwc.dtype
    itemsize = jnp.dtype(dtype).itemsize
    WC = W * C

    masks = jnp.asarray(masks)
    if masks.ndim == 1:
        masks = masks[None]
    masks = masks.reshape(masks.shape[0], -1)
    N = masks.shape[0]

    # Per-channel mean accumulated in f32 (bf16/fp8-safe), cast back to dtype.
    if mask_value is None:
        mask_value = jnp.mean(image_hwc.astype(jnp.float32), axis=(0, 1))
    mask_value = jnp.broadcast_to(
        jnp.asarray(mask_value, jnp.float32).reshape(-1), (C,)).astype(dtype)

    if needed == 0:
        # Image smaller than one super pixel: nothing is ever replaced.
        return jnp.broadcast_to(image_hwc[None], (N, H, W, C))

    # --- glue: flatten / truncate / pad-with-1 (per mask) ---
    flat = masks
    if flat.shape[1] > needed:
        flat = flat[:, :needed]
    elif flat.shape[1] < needed:
        flat = jnp.pad(flat, ((0, 0), (0, needed - flat.shape[1])),
                       constant_values=1)

    # --- generation-aware tiling / VMEM budget ---
    vmem_phys = _tpu_vmem_bytes()
    vmem_limit = min(max(vmem_phys // 2, 16 << 20), 64 << 20)
    max_tile_bytes = max((vmem_limit - (2 << 20)) // 5, 1 << 20)
    num_tc = _num_tensorcores_per_chip()
    min_total_steps = 4 if num_tc >= 2 else 2
    if num_tc < 2 and H * WC * itemsize <= (2 << 20):
        min_total_steps = 1   # tiny image on a single-TC chip: one resident block

    R = _pick_rows_per_block(h_super, sps, H, WC * itemsize, max_tile_bytes,
                             min_total_steps, N)
    if R is None:
        # TODO(synk): super_pixel_size with no multiple-of-8 row tile (and ragged H)
        # has no clean Mosaic sublane tiling; fall back to a plain XLA select.
        return _superpixler_plain(image_hwc, flat, sps, mask_value,
                                  h_super, w_super, N)

    TH = R * sps
    n_row_blocks = -(-H // TH)            # cdiv; trailing block may be partial
    h_rows_pad = n_row_blocks * R

    # Per-super-row int8 lane mask over the (W*C) lane axis: nonzero => replace.
    replace = (flat.reshape(N, h_super, w_super) == 0).astype(jnp.int8)
    lane_mask = jnp.repeat(replace, sps * C, axis=2)      # (N, h_super, w_super*sps*C)
    pad_lanes = WC - w_super * sps * C                    # W remainder: keep image
    lane_mask = jnp.pad(lane_mask,
                        ((0, 0), (0, h_rows_pad - h_super), (0, pad_lanes)))
    lane_mask = lane_mask.reshape(N, h_rows_pad, 1, WC)

    mv_lane = jnp.tile(mask_value, W).reshape(1, WC)      # replacement colours
    img2 = image_hwc.reshape(H, WC)                       # free row-major view

    # Raise the scoped-VMEM limit if even the smallest legal tile needs it.
    tile_bytes = TH * WC * itemsize
    footprint = 4 * tile_bytes + 4 * R * WC + 2 * WC * itemsize + (1 << 20)
    vmem_limit = int(min(max(vmem_limit, footprint), vmem_phys - (2 << 20)))
    # TODO(synk): lane-axis (W*C) splitting is not implemented; absurdly wide
    # images that exceed physical VMEM even at R=1 are out of scope.

    cost = pl.CostEstimate(
        flops=N * H * WC,
        transcendentals=0,
        bytes_accessed=(H * WC * itemsize          # image read (resident across masks)
                        + N * H * WC * itemsize    # masked outputs
                        + N * h_rows_pad * WC      # int8 lane masks
                        + WC * itemsize))

    out2 = pl.pallas_call(
        _make_superpixler_kernel(R, sps, WC),
        out_shape=jax.ShapeDtypeStruct((N, H, WC), dtype),
        grid_spec=pl.GridSpec(
            # masks innermost: image row-block is not re-DMA'd per mask
            grid=(n_row_blocks, N),
            in_specs=[
                pl.BlockSpec((TH, WC), lambda r, n: (r, 0)),             # image tile
                pl.BlockSpec((1, R, 1, WC), lambda r, n: (n, r, 0, 0)),  # int8 mask
                pl.BlockSpec((1, WC), lambda r, n: (0, 0)),              # mask colour
            ],
            out_specs=pl.BlockSpec((1, TH, WC), lambda r, n: (n, r, 0)),
        ),
        compiler_params=pltpu.CompilerParams(
            dimension_semantics=("parallel", "parallel"),
            vmem_limit_bytes=vmem_limit),
        cost_estimate=cost,
    )(img2, lane_mask, mv_lane)

    return out2.reshape(N, H, W, C)


def superpixler_forward(image_hwc, mask, super_pixel_size=16, mask_value=None):
    """Pallas implementation of SuperPixler.forward for a single mask."""
    out = superpixler_forward_batch(image_hwc, jnp.asarray(mask).reshape(1, -1),
                                    super_pixel_size=super_pixel_size,
                                    mask_value=mask_value)
    return out[0]


# --------------------------------------------------------------------------
# Demo / correctness check
# --------------------------------------------------------------------------
if __name__ == "__main__":
    key = jax.random.PRNGKey(0)
    k_img, k_mask, k_img2, k_mask2 = jax.random.split(key, 4)

    # ---- Test 1: aligned image, batch of masks (the SHAP hot path) ----
    H, W, C, SPS = 64, 64, 4, 16
    h_s, w_s = H // SPS, W // SPS          # 4 x 4 -> 16 super pixels
    N = 3
    image = jax.random.uniform(k_img, (H, W, C), dtype=jnp.float32)
    masks = jax.random.bernoulli(k_mask, p=0.5, shape=(N, h_s * w_s)).astype(
        jnp.float32)

    out = jax.block_until_ready(
        superpixler_forward_batch(image, masks, super_pixel_size=SPS))

    mv = jnp.mean(image.astype(jnp.float32), axis=(0, 1)).astype(image.dtype)
    mgrid = masks.reshape(N, h_s, w_s)
    mfull = jnp.repeat(jnp.repeat(mgrid, SPS, axis=1), SPS, axis=2)   # (N, H, W)
    ref = jnp.where((mfull == 0)[..., None], mv, image[None])
    assert out.shape == (N, H, W, C)
    assert jnp.allclose(out, ref, atol=0, rtol=0)

    # ---- Test 2: single mask, H and W remainders (in-kernel tail handling) ----
    H2, W2 = 72, 72                        # 72 = 4*16 + 8 remainder rows/cols
    h_s2, w_s2 = H2 // SPS, W2 // SPS
    image2 = jax.random.uniform(k_img2, (H2, W2, C), dtype=jnp.float32)
    mask2 = jax.random.bernoulli(k_mask2, p=0.5,
                                 shape=(h_s2 * w_s2,)).astype(jnp.float32)

    out2 = jax.block_until_ready(
        superpixler_forward(image2, mask2, super_pixel_size=SPS))

    mv2 = jnp.mean(image2.astype(jnp.float32), axis=(0, 1)).astype(image2.dtype)
    rep2 = jnp.zeros((H2, W2), dtype=bool)
    rep2 = rep2.at[:h_s2 * SPS, :w_s2 * SPS].set(
        jnp.repeat(jnp.repeat(mask2.reshape(h_s2, w_s2) == 0, SPS, 0), SPS, 1))
    ref2 = jnp.where(rep2[..., None], mv2, image2)
    assert out2.shape == (H2, W2, C)
    assert jnp.allclose(out2, ref2, atol=0, rtol=0)

    print("KERNEL_OK")
</pallas_src>

<mosaic_0001>
module attributes {stable_mosaic.version = 11 : i64} {
  func.func @kernel(%arg0: i32, %arg1: i32, %arg2: memref<64x256xf32, #tpu.memory_space<vmem>>, %arg3: memref<1x4x1x256xi8, #tpu.memory_space<vmem>>, %arg4: memref<1x256xf32, #tpu.memory_space<vmem>>, %arg5: memref<1x64x256xf32, #tpu.memory_space<vmem>>) attributes {dimension_semantics = [#tpu.dimension_semantics<parallel>, #tpu.dimension_semantics<parallel>], iteration_bounds = array<i64: 1, 3>, scalar_prefetch = 0 : i64, scratch_operands = 0 : i64, tpu.core_type = #tpu.core_type<tc>, window_params = [{transform_indices = @transform_0, window_bounds = array<i64: 64, 256>}, {transform_indices = @transform_1, window_bounds = array<i64: 1, 4, 1, 256>}, {pipeline_mode = #tpu.pipeline_mode<synchronous>, transform_indices = @transform_2, window_bounds = array<i64: 1, 256>}, {transform_indices = @transform_3, window_bounds = array<i64: 1, 64, 256>}]} {
    %c0 = arith.constant 0 : index
    %c0_0 = arith.constant 0 : index
    %c0_1 = arith.constant 0 : index
    %c0_2 = arith.constant 0 : index
    %0 = vector.load %arg3[%c0, %c0_0, %c0_1, %c0_2] : memref<1x4x1x256xi8, #tpu.memory_space<vmem>>, vector<1x4x1x256xi8>
    %1 = vector.shape_cast %0 : vector<1x4x1x256xi8> to vector<4x1x256xi8>
    %2 = arith.extsi %1 : vector<4x1x256xi8> to vector<4x1x256xi32>
    %3 = vector.shape_cast %2 : vector<4x1x256xi32> to vector<4x1x256xi32>
    %4 = vector.broadcast %3 : vector<4x1x256xi32> to vector<4x16x256xi32>
    %5 = vector.shape_cast %4 : vector<4x16x256xi32> to vector<64x256xi32>
    %c0_i32 = arith.constant 0 : i32
    %6 = vector.broadcast %c0_i32 : i32 to vector<64x256xi32>
    %7 = arith.cmpi ne, %5, %6 : vector<64x256xi32>
    %c0_3 = arith.constant 0 : index
    %c0_4 = arith.constant 0 : index
    %8 = vector.load %arg4[%c0_3, %c0_4] : memref<1x256xf32, #tpu.memory_space<vmem>>, vector<1x256xf32>
    %c0_5 = arith.constant 0 : index
    %c0_6 = arith.constant 0 : index
    %9 = vector.load %arg2[%c0_5, %c0_6] : memref<64x256xf32, #tpu.memory_space<vmem>>, vector<64x256xf32>
    %10 = vector.shape_cast %8 : vector<1x256xf32> to vector<1x256xf32>
    %11 = vector.broadcast %10 : vector<1x256xf32> to vector<64x256xf32>
    %12 = arith.select %7, %11, %9 : vector<64x256xi1>, vector<64x256xf32>
    %c0_7 = arith.constant 0 : index
    %c0_8 = arith.constant 0 : index
    %c0_9 = arith.constant 0 : index
    %13 = vector.load %arg5[%c0_7, %c0_8, %c0_9] : memref<1x64x256xf32, #tpu.memory_space<vmem>>, vector<1x64x256xf32>
    %14 = vector.shape_cast %13 : vector<1x64x256xf32> to vector<64x256xf32>
    %15 = vector.shape_cast %12 : vector<64x256xf32> to vector<1x64x256xf32>
    tpu.vector_store %arg5[%c0_7, %c0_8, %c0_9], %15 {strides = array<i32>} : memref<1x64x256xf32, #tpu.memory_space<vmem>>, vector<1x64x256xf32>,
    return
  }
  func.func @transform_0(%arg0: i32, %arg1: i32) -> (i32, i32) {
    %c0_i32 = arith.constant 0 : i32
    %c0_i32_0 = arith.constant 0 : i32
    return %arg0, %c0_i32 : i32, i32
  }
  func.func @transform_1(%arg0: i32, %arg1: i32) -> (i32, i32, i32, i32) {
    %c0_i32 = arith.constant 0 : i32
    %c0_i32_0 = arith.constant 0 : i32
    %c0_i32_1 = arith.constant 0 : i32
    return %arg1, %arg0, %c0_i32, %c0_i32_0 : i32, i32, i32, i32
  }
  func.func @transform_2(%arg0: i32, %arg1: i32) -> (i32, i32) {
    %c0_i32 = arith.constant 0 : i32
    %c0_i32_0 = arith.constant 0 : i32
    %c0_i32_1 = arith.constant 0 : i32
    return %c0_i32, %c0_i32_0 : i32, i32
  }
  func.func @transform_3(%arg0: i32, %arg1: i32) -> (i32, i32, i32) {
    %c0_i32 = arith.constant 0 : i32
    %c0_i32_0 = arith.constant 0 : i32
    return %arg1, %arg0, %c0_i32 : i32, i32, i32
  }
}

</mosaic_0001>

<llo_original>
// kernel: tpu_custom_call.1
$region0: #{tpu_custom_call.1}
  #allocation0 [shape = 'u32[]', space=smem, size = 0x4, offset = 0x4, fixed_abs, tag = 'smem constant byte address 0x4 - core index']
  #allocation1 [shape = 'u32[144,128]{1,0:T(1,128)}', space=vmem, size = 0x12000, scoped, tag = 'internal scratch']
  %s0 = inlined_call_operand.hbm [shape: f32[64,256], index: 0, kind: input, shape index: {}]
  %s1 = inlined_call_operand.vmem [shape: s8[3,4,1,256], index: 1, kind: input, shape index: {}]
  %s2 = inlined_call_operand.vmem [shape: f32[1,256], index: 2, kind: input, shape index: {}]
  %s3 = inlined_call_operand.hbm [shape: f32[3,64,256], index: 3, kind: output, shape index: {}]
  %s4 = sld [smem:[#allocation0]]
  $region49: #{tpu_custom_call.1} parent=0
    _
  %s6 = ssub.s32 1, %s4
  %s7 = scalar_select 0, %s6, %s4
  $region1: #{tpu_custom_call.1} parent=0
    #allocation2 [shape = 'u8[65536]{0}', space=vmem, size = 0x10000, scoped, tag = 'input window, operand 0, single buffered']
    #allocation3 [shape = 's32[2]{0}', space=sflag, size = 0x8, scoped, tag = 'scoped memory for tpu_custom_call.1']
    #allocation4 [shape = 's32[2]{0}', space=sflag, size = 0x8, scoped, tag = 'scoped memory for tpu_custom_call.1']
    #allocation5 [shape = 'u8[131072]{0}', space=vmem, size = 0x20000, scoped, tag = 'output window, operand 0']
    %8 = vsyncpa [#allocation3], 0
    %9 = vsyncpa [#allocation4], 0
    %s10 = scalar_lea.sflag [#allocation4], 1
    %11 = vsyncpa %s10, 0
    loop: start=0, step=1, limit=5
    $region2: #{tpu_custom_call.1} parent=1 // loop_pre_header
      _
    $region3: #{tpu_custom_call.1} parent=1 // loop_header
      %s13 = sphi 0, %s17
      %p14 = scmp.ge.s32.totalorder %s13, 5
      %s20 = sphi 0, %s32
      %s21 = sphi 0, %s28
      %s22 = sphi 0, %s20
      %s23 = sphi 0, %s21
      %s24 = sphi 0, %s22
      %s25 = sphi 0, %s23
      %s35 = sphi 0, %s37
      %s38 = sphi 0, %s35
      %s39 = sphi 0, %s38
      %s55 = sphi 0, %s39
      %s63 = sphi 0, %s65
      %s66 = sphi 0, %s63
      %s67 = sphi 0, %s66
      %s83 = sphi 0, %s67
      %s87 = sphi 0, %s87
      %s89 = sphi 0, %s87
      %s90 = sphi 0, %s89
      %s104 = sphi 0, %s90
      %s112 = sphi 0, %s114
      %s115 = sphi 0, %s112
      %s116 = sphi 0, %s115
      %s132 = sphi 0, %s116
    $region4: #{tpu_custom_call.1} parent=1 // loop_header_branch
      %16 = sbr.rel (%p14) target = $region8
    $region5: #{tpu_custom_call.1} parent=1 // loop_body
      %s18 = ssub.s32 %s13, 1
      %s19 = ssub.s32 %s13, 2
      %s26 = sadd.s32 1, %s21
      %p27 = scmp.ge.s32.totalorder %s26, 3
      %s28 = scalar_select %p27, 0, %s26
      %s29 = sadd.s32 1, %s20
      %s30 = scalar_select %p27, %s29, %s20
      %p31 = scmp.ge.s32.totalorder %s30, 1
      %s32 = scalar_select %p31, 0, %s30
      %s33 = ssub.s32 %s20, %s32
      %p34 = scmp.eq.s32.totalorder %s33, 0
      %s36 = sadd.s32 %s35, 1
      %s37 = scalar_select %p34, %s35, %s36
      %p40 = pneg %p34
      %p41 = scmp.eq.s32.totalorder %s13, 2
      %p42 = por %p40, %p41
      %p43 = scmp.ne.s32.totalorder %s35, %s38
      %p44 = scmp.eq.s32.totalorder %s13, 0
      %p45 = por %p43, %p44
      %p46 = scmp.ne.s32.totalorder %s35, %s38
      %p47 = scmp.eq.s32.totalorder %s18, 2
      %p48 = por %p46, %p47
      %p49 = scmp.ne.s32.totalorder %s38, %s39
      %p50 = scmp.eq.s32.totalorder %s18, 0
      %p51 = por %p49, %p50
      %p52 = scmp.ne.s32.totalorder %s38, %s39
      %p53 = scmp.eq.s32.totalorder %s19, 2
      %p54 = por %p52, %p53
      %p56 = scmp.ne.s32.totalorder %s39, %s55
      %p57 = scmp.eq.s32.totalorder %s19, 0
      %p58 = por %p56, %p57
      %s59 = ssub.s32 %s21, %s28
      %s60 = ssub.s32 %s20, %s32
      %s61 = sor.u32 %s59, %s60
      %p62 = scmp.eq.s32.totalorder %s61, 0
      %s64 = sadd.s32 %s63, 1
      %s65 = scalar_select %p62, %s63, %s64
      %p68 = pneg %p62
      %p69 = scmp.eq.s32.totalorder %s13, 2
      %p70 = por %p68, %p69
      %p71 = scmp.ne.s32.totalorder %s63, %s66
      %p72 = scmp.eq.s32.totalorder %s13, 0
      %p73 = por %p71, %p72
      %p74 = scmp.ne.s32.totalorder %s63, %s66
      %p75 = scmp.eq.s32.totalorder %s18, 2
      %p76 = por %p74, %p75
      %p77 = scmp.ne.s32.totalorder %s66, %s67
      %p78 = scmp.eq.s32.totalorder %s18, 0
      %p79 = por %p77, %p78
      %p80 = scmp.ne.s32.totalorder %s66, %s67
      %p81 = scmp.eq.s32.totalorder %s19, 2
      %p82 = por %p80, %p81
      %p84 = scmp.ne.s32.totalorder %s67, %s83
      %p85 = scmp.eq.s32.totalorder %s19, 0
      %p86 = por %p84, %p85
      %s88 = sadd.s32 %s87, 1
      %p91 = scmp.eq.s32.totalorder %s13, 2
      %p92 = scmp.ne.s32.totalorder %s87, %s89
      %p93 = scmp.eq.s32.totalorder %s13, 0
      %p94 = por %p92, %p93
      %p95 = scmp.ne.s32.totalorder %s87, %s89
      %p96 = scmp.eq.s32.totalorder %s18, 2
      %p97 = por %p95, %p96
      %p98 = scmp.ne.s32.totalorder %s89, %s90
      %p99 = scmp.eq.s32.totalorder %s18, 0
      %p100 = por %p98, %p99
      %p101 = scmp.ne.s32.totalorder %s89, %s90
      %p102 = scmp.eq.s32.totalorder %s19, 2
      %p103 = por %p101, %p102
      %p105 = scmp.ne.s32.totalorder %s90, %s104
      %p106 = scmp.eq.s32.totalorder %s19, 0
      %p107 = por %p105, %p106
      %s108 = ssub.s32 %s21, %s28
      %s109 = ssub.s32 %s20, %s32
      %s110 = sor.u32 %s108, %s109
      %p111 = scmp.eq.s32.totalorder %s110, 0
      %s113 = sadd.s32 %s112, 1
      %s114 = scalar_select %p111, %s112, %s113
      %p117 = pneg %p111
      %p118 = scmp.eq.s32.totalorder %s13, 2
      %p119 = por %p117, %p118
      %p120 = scmp.ne.s32.totalorder %s112, %s115
      %p121 = scmp.eq.s32.totalorder %s13, 0
      %p122 = por %p120, %p121
      %p123 = scmp.ne.s32.totalorder %s112, %s115
      %p124 = scmp.eq.s32.totalorder %s18, 2
      %p125 = por %p123, %p124
      %p126 = scmp.ne.s32.totalorder %s115, %s116
      %p127 = scmp.eq.s32.totalorder %s18, 0
      %p128 = por %p126, %p127
      %p129 = scmp.ne.s32.totalorder %s115, %s116
      %p130 = scmp.eq.s32.totalorder %s19, 2
      %p131 = por %p129, %p130
      %p133 = scmp.ne.s32.totalorder %s116, %s132
      %p134 = scmp.eq.s32.totalorder %s19, 0
      %p135 = por %p133, %p134
      %p136 = scmp.le.s32.totalorder 1, %s13
      %p137 = scmp.lt.s32.totalorder %s13, 4
      %p138 = pnand %p136, %p137
      %p139 = pneg %p138
      // Predicated region
      $region9: #{tpu_custom_call.1} parent=5 // pred_check
        _
      $region10: #{tpu_custom_call.1} parent=5 // pred_check_branch
        %141 = sbr.rel (%p138) target = $region12
      $region11: #{tpu_custom_call.1} parent=5 // pred_region
        %s142 = ssub.s32 %s13, 1
        // Predicated region
        $region13: #{tpu_custom_call.1} parent=11 // pred_check
          %p143 = pneg %p51
        $region14: #{tpu_custom_call.1} parent=11 // pred_check_branch
          %145 = sbr.rel (%p143) target = $region16
        $region15: #{tpu_custom_call.1} parent=11 // pred_region
          %s146 = smul.u32 8, %s22
          %s148 = ssub.s32 2048, 2048
          %149 = vsyncadd [#allocation3], %s148
          %s150 = smul.addr %s146, 2
          %s151 = smul.addr %s150, 128
          %s152 = scalar_lea.hbm %s0, %s151
          %s153 = sshll.u32 [#allocation2], 4
          %s154 = int_to_ptr.vmem [resolvable:$true] %s153
          %159 = dma.hbm_to_vmem [thread:$0]  %s152, 2048, %s154, [#allocation3], 256, 256, 16
        $region16: #{tpu_custom_call.1} parent=11 // pred_fallthru
          _
        // Predicated region
        $region17: #{tpu_custom_call.1} parent=11 // pred_check
          %p160 = pneg %p100
        $region18: #{tpu_custom_call.1} parent=11 // pred_check_branch
          %162 = sbr.rel (%p160) target = $region20
        $region19: #{tpu_custom_call.1} parent=11 // pred_region
          _
        $region20: #{tpu_custom_call.1} parent=11 // pred_fallthru
          _
      $region12: #{tpu_custom_call.1} parent=5 // pred_fallthru
        _
      %p163 = scmp.lt.s32.totalorder %s13, 3
      // Predicated region
      $region21: #{tpu_custom_call.1} parent=5 // pred_check
        %p164 = pneg %p163
      $region22: #{tpu_custom_call.1} parent=5 // pred_check_branch
        %166 = sbr.rel (%p164) target = $region24
      $region23: #{tpu_custom_call.1} parent=5 // pred_region
        // Predicated region
        $region25: #{tpu_custom_call.1} parent=23 // pred_check
          %p167 = pneg %p73
        $region26: #{tpu_custom_call.1} parent=23 // pred_check_branch
          %169 = sbr.rel (%p167) target = $region28
        $region27: #{tpu_custom_call.1} parent=23 // pred_region
          %s170 = smul.u32 4, %s20
          %p171 = scmp.lt.s32.totalorder %s21, 2
          %s172 = scalar_select %p171, %s21, 2
          %p173 = scmp.lt.s32.totalorder %s170, 3
          %s174 = scalar_select %p173, %s170, 3
          %s175 = smul.addr %s174, 2
          %s176 = smul.addr %s172, 8
          %s177 = sadd.s32 %s175, %s176
          %s178 = scalar_lea.vmem %s1, %s177
          %s179 = smul.u32 4, %s20
        $region28: #{tpu_custom_call.1} parent=23 // pred_fallthru
          _
      $region24: #{tpu_custom_call.1} parent=5 // pred_fallthru
        _
      %p180 = scmp.le.s32.totalorder 1, %s13
      %p181 = scmp.lt.s32.totalorder %s13, 4
      %p182 = pnand %p180, %p181
      %p183 = pneg %p182
      // Predicated region
      $region29: #{tpu_custom_call.1} parent=5 // pred_check
        _
      $region30: #{tpu_custom_call.1} parent=5 // pred_check_branch
        %185 = sbr.rel (%p182) target = $region32
      $region31: #{tpu_custom_call.1} parent=5 // pred_region
        %s186 = ssub.s32 %s13, 1
        // Predicated region
        $region33: #{tpu_custom_call.1} parent=31 // pred_check
          %p187 = pneg %p51
        $region34: #{tpu_custom_call.1} parent=31 // pred_check_branch
          %189 = sbr.rel (%p187) target = $region36
        $region35: #{tpu_custom_call.1} parent=31 // pred_region
          %190 = dma.done [#allocation3], 2048
        $region36: #{tpu_custom_call.1} parent=31 // pred_fallthru
          _
        %p191 = pneg %p51
        %p192 = pneg %p48
        %s193 = smul.u32 4, %s22
        %p194 = scmp.lt.s32.totalorder %s23, 2
        %s195 = scalar_select %p194, %s23, 2
        %p196 = scmp.lt.s32.totalorder %s193, 3
        %s197 = scalar_select %p196, %s193, 3
        %s198 = smul.addr %s197, 2
        %s199 = smul.addr %s195, 8
        %s200 = sadd.s32 %s198, %s199
        %s201 = scalar_lea.vmem %s1, %s200
        %p202 = pneg %p79
        %p203 = pneg %p76
        %p204 = pneg %p100
        %p205 = pneg %p97
        %p206 = pneg %p128
        %p207 = pneg %p125
        %s208 = sand.u32 %s115, 1
        %s209 = scalar_lea.sflag [#allocation4], %s208
        %s210 = sand.u32 %s115, 1
        %s211 = smul.addr %s210, 128
        %s212 = scalar_lea.vmem [#allocation5], %s211
        %s213 = smul.u32 8, %s22
        %s214 = smul.u32 4, %s22
        %p215 = scmp.lt.s32.totalorder %s23, 2
        %s216 = scalar_select %p215, %s23, 2
        %p217 = scmp.lt.s32.totalorder %s214, 3
        %s218 = scalar_select %p217, %s214, 3
        %s219 = smul.addr %s218, 2
        %s220 = smul.addr %s216, 8
        %s221 = sadd.s32 %s219, %s220
        %s222 = scalar_lea.vmem %s1, %s221
        %s223 = smul.u32 4, %s22
        %s224 = smul.u32 8, %s22
        %v225 = vld [vmem:[%s222] sm:$0x3]
        %v226 = vld [vmem:[%s222 + $0x2] sm:$0x3]
        %v227 = vld [vmem:[%s222 + $0x4] sm:$0x3]
        %v228 = vld [vmem:[%s222 + $0x6] sm:$0x3]
        %v229 = vunpack.c.0.s8 %v225
        %v230 = vunpack.c.0.s8 %v226
        %v231 = vunpack.c.0.s8 %v227
        %v232 = vunpack.c.0.s8 %v228
        %v233 = vlaneseq
        %v234 = vshrl.u32 %v233, 7
        %v235 = vsub.s32 0, %v234
        %v236 = vrot.slane %v229, %v235
        %v237 = vlaneseq
        %v238 = vshrl.u32 %v237, 7
        %v239 = vsub.s32 4, %v238
        %v240 = vrot.slane %v229, %v239
        %v241 = vlaneseq
        %v242 = vshrl.u32 %v241, 7
        %v243 = vsub.s32 0, %v242
        %v244 = vrot.slane %v230, %v243
        %v245 = vlaneseq
        %v246 = vshrl.u32 %v245, 7
        %v247 = vsub.s32 4, %v246
        %v248 = vrot.slane %v230, %v247
        %v249 = vlaneseq
        %v250 = vshrl.u32 %v249, 7
        %v251 = vsub.s32 0, %v250
        %v252 = vrot.slane %v231, %v251
        %v253 = vlaneseq
        %v254 = vshrl.u32 %v253, 7
        %v255 = vsub.s32 4, %v254
        %v256 = vrot.slane %v231, %v255
        %v257 = vlaneseq
        %v258 = vshrl.u32 %v257, 7
        %v259 = vsub.s32 0, %v258
        %v260 = vrot.slane %v232, %v259
        %v261 = vlaneseq
        %v262 = vshrl.u32 %v261, 7
        %v263 = vsub.s32 4, %v262
        %v264 = vrot.slane %v232, %v263
        %v265 = vlaneseq
        %v266 = vshrl.u32 %v265, 7
        %v267 = vsub.s32 0, %v266
        %v268 = vrot.slane %v236, %v267
        %v269 = vlaneseq
        %v270 = vshrl.u32 %v269, 7
        %v271 = vsub.s32 0, %v270
        %v272 = vrot.slane %v240, %v271
        %v273 = vlaneseq
        %v274 = vshrl.u32 %v273, 7
        %v275 = vsub.s32 0, %v274
        %v276 = vrot.slane %v244, %v275
        %v277 = vlaneseq
        %v278 = vshrl.u32 %v277, 7
        %v279 = vsub.s32 0, %v278
        %v280 = vrot.slane %v248, %v279
        %v281 = vlaneseq
        %v282 = vshrl.u32 %v281, 7
        %v283 = vsub.s32 0, %v282
        %v284 = vrot.slane %v252, %v283
        %v285 = vlaneseq
        %v286 = vshrl.u32 %v285, 7
        %v287 = vsub.s32 0, %v286
        %v288 = vrot.slane %v256, %v287
        %v289 = vlaneseq
        %v290 = vshrl.u32 %v289, 7
        %v291 = vsub.s32 0, %v290
        %v292 = vrot.slane %v260, %v291
        %v293 = vlaneseq
        %v294 = vshrl.u32 %v293, 7
        %v295 = vsub.s32 0, %v294
        %v296 = vrot.slane %v264, %v295
        %vm297 = vcmp.ne.s32.totalorder %v268, 0
        %vm298 = vcmp.ne.s32.totalorder %v272, 0
        %vm299 = vcmp.ne.s32.totalorder %v276, 0
        %vm300 = vcmp.ne.s32.totalorder %v280, 0
        %vm301 = vcmp.ne.s32.totalorder %v284, 0
        %vm302 = vcmp.ne.s32.totalorder %v288, 0
        %vm303 = vcmp.ne.s32.totalorder %v292, 0
        %vm304 = vcmp.ne.s32.totalorder %v296, 0
        %v305 = vld [vmem:[%s2] sm:$0x3]
        %v306 = vld [vmem:[#allocation2] sm:$0xff]
        %v307 = vld [vmem:[#allocation2 + $0x8] sm:$0xff]
        %v308 = vld [vmem:[#allocation2 + $0x10] sm:$0xff]
        %v309 = vld [vmem:[#allocation2 + $0x18] sm:$0xff]
        %v310 = vld [vmem:[#allocation2 + $0x20] sm:$0xff]
        %v311 = vld [vmem:[#allocation2 + $0x28] sm:$0xff]
        %v312 = vld [vmem:[#allocation2 + $0x30] sm:$0xff]
        %v313 = vld [vmem:[#allocation2 + $0x38] sm:$0xff]
        %v314 = vld [vmem:[#allocation2 + $0x40] sm:$0xff]
        %v315 = vld [vmem:[#allocation2 + $0x48] sm:$0xff]
        %v316 = vld [vmem:[#allocation2 + $0x50] sm:$0xff]
        %v317 = vld [vmem:[#allocation2 + $0x58] sm:$0xff]
        %v318 = vld [vmem:[#allocation2 + $0x60] sm:$0xff]
        %v319 = vld [vmem:[#allocation2 + $0x68] sm:$0xff]
        %v320 = vld [vmem:[#allocation2 + $0x70] sm:$0xff]
        %v321 = vld [vmem:[#allocation2 + $0x78] sm:$0xff]
        %v323 = vlaneseq
        %v324 = vshrl.u32 %v323, 7
        %v325 = vsub.s32 0, %v324
        %v326 = vrot.slane %v305, %v325
        %v327 = vlaneseq
        %v328 = vshrl.u32 %v327, 7
        %v329 = vsub.s32 1, %v328
        %v330 = vrot.slane %v305, %v329
        %v333 = vsel %vm297, %v326, %v306
        %v334 = vsel %vm298, %v330, %v307
        %v335 = vsel %vm297, %v326, %v308
        %v336 = vsel %vm298, %v330, %v309
        %v337 = vsel %vm299, %v326, %v310
        %v338 = vsel %vm300, %v330, %v311
        %v339 = vsel %vm299, %v326, %v312
        %v340 = vsel %vm300, %v330, %v313
        %v341 = vsel %vm301, %v326, %v314
        %v342 = vsel %vm302, %v330, %v315
        %v343 = vsel %vm301, %v326, %v316
        %v344 = vsel %vm302, %v330, %v317
        %v345 = vsel %vm303, %v326, %v318
        %v346 = vsel %vm304, %v330, %v319
        %v347 = vsel %vm303, %v326, %v320
        %v348 = vsel %vm304, %v330, %v321
        %349 = vst [vmem:[%s212] sm:$0xff] %v333
        %350 = vst [vmem:[%s212 + $0x8] sm:$0xff] %v334
        %351 = vst [vmem:[%s212 + $0x10] sm:$0xff] %v335
        %352 = vst [vmem:[%s212 + $0x18] sm:$0xff] %v336
        %353 = vst [vmem:[%s212 + $0x20] sm:$0xff] %v337
        %354 = vst [vmem:[%s212 + $0x28] sm:$0xff] %v338
        %355 = vst [vmem:[%s212 + $0x30] sm:$0xff] %v339
        %356 = vst [vmem:[%s212 + $0x38] sm:$0xff] %v340
        %357 = vst [vmem:[%s212 + $0x40] sm:$0xff] %v341
        %358 = vst [vmem:[%s212 + $0x48] sm:$0xff] %v342
        %359 = vst [vmem:[%s212 + $0x50] sm:$0xff] %v343
        %360 = vst [vmem:[%s212 + $0x58] sm:$0xff] %v344
        %361 = vst [vmem:[%s212 + $0x60] sm:$0xff] %v345
        %362 = vst [vmem:[%s212 + $0x68] sm:$0xff] %v346
        %363 = vst [vmem:[%s212 + $0x70] sm:$0xff] %v347
        %364 = vst [vmem:[%s212 + $0x78] sm:$0xff] %v348
        %s365 = sand.u32 %s115, 1
        %s366 = scalar_lea.sflag [#allocation4], %s365
        %s367 = sand.u32 %s115, 1
        %s368 = smul.addr %s367, 128
        %s369 = scalar_lea.vmem [#allocation5], %s368
        // Predicated region
        $region37: #{tpu_custom_call.1} parent=31 // pred_check
          %p370 = pneg %p125
        $region38: #{tpu_custom_call.1} parent=31 // pred_check_branch
          %372 = sbr.rel (%p370) target = $region40
        $region39: #{tpu_custom_call.1} parent=31 // pred_region
          %s373 = smul.u32 8, %s22
          %s375 = ssub.s32 2048, 2048
          %376 = vsyncadd %s366, %s375
          %s377 = smul.addr %s373, 2
          %s378 = smul.addr %s23, 16
          %s379 = sadd.s32 %s377, %s378
          %s380 = smul.addr %s379, 128
          %s381 = scalar_lea.hbm %s3, %s380
          %s382 = sshll.u32 %s369, 4
          %s383 = int_to_ptr.vmem [resolvable:$true] %s382
          %388 = dma.vmem_to_hbm [thread:$0]  %s383, 2048, %s381, %s366, 256, 256, 16
        $region40: #{tpu_custom_call.1} parent=31 // pred_fallthru
          _
      $region32: #{tpu_custom_call.1} parent=5 // pred_fallthru
        _
      %p389 = scmp.le.s32.totalorder 2, %s13
      // Predicated region
      $region41: #{tpu_custom_call.1} parent=5 // pred_check
        %p390 = pneg %p389
      $region42: #{tpu_custom_call.1} parent=5 // pred_check_branch
        %392 = sbr.rel (%p390) target = $region44
      $region43: #{tpu_custom_call.1} parent=5 // pred_region
        %s393 = ssub.s32 %s13, 2
        // Predicated region
        $region45: #{tpu_custom_call.1} parent=43 // pred_check
          %p394 = pneg %p131
        $region46: #{tpu_custom_call.1} parent=43 // pred_check_branch
          %396 = sbr.rel (%p394) target = $region48
        $region47: #{tpu_custom_call.1} parent=43 // pred_region
          %s397 = sand.u32 %s116, 1
          %s398 = scalar_lea.sflag [#allocation4], %s397
          %s399 = sand.u32 %s116, 1
          %s400 = smul.addr %s399, 128
          %s401 = scalar_lea.vmem [#allocation5], %s400
          %402 = dma.done %s398, 2048
        $region48: #{tpu_custom_call.1} parent=43 // pred_fallthru
          _
      $region44: #{tpu_custom_call.1} parent=5 // pred_fallthru
        _
    $region6: #{tpu_custom_call.1} parent=1 // loop_footer
      %s17 = sadd.s32 1, %s13
    $region7: #{tpu_custom_call.1} parent=1 // loop_footer_branch
      %12 = sbr.rel target = $region3
    $region8: #{tpu_custom_call.1} parent=1 // loop_exit
      _
    %403 = vsyncpa [#allocation3], 1
    %s404 = scalar_lea.sflag [#allocation3], 1
    %405 = vsyncpa %s404, 1
    %406 = vsyncpa [#allocation4], 1
    %s407 = scalar_lea.sflag [#allocation4], 1
    %408 = vsyncpa %s407, 1

</llo_original>
